<compile_context>
chip_gen: v5e
topology: v5e:2x2
jax: 0.10.0
libtpu: 0.0.40
codegen_flags: <defaults>
</compile_context>

<pallas_src>
import functools

import jax
import jax.numpy as jnp
from jax.experimental import pallas as pl
from jax.experimental.pallas import tpu as pltpu


def _round_up(x, m):
    return (x + m - 1) // m * m


def _dqn_kernel(x_ref, w13_ref, w2_ref, b_ref, out_ref, *, n_obs, n_actions):
    B = x_ref.shape[0]
    H = w2_ref.shape[0]

    x = x_ref[...]        # (B, n_obs)           -- tiny, lives in a few vregs
    w13 = w13_ref[...]    # (rows_pad, H)        -- packed W1 rows + W3^T rows
    b = b_ref[...]        # (8, H)               -- packed biases

    # ---- layer 1 (VPU): h1 = relu(x @ W1 + b1) as n_obs broadcast FMAs ----
    acc = x[:, 0:1] * w13[0:1, :] + b[0:1, :]          # (B,1)*(1,H) + (1,H)
    for k in range(1, n_obs):                          # static unroll (n_obs small)
        acc = acc + x[:, k:k + 1] * w13[k:k + 1, :]
    h1 = jnp.maximum(acc, 0.0)

    # ---- layer 2 (MXU): the only dense (H x H) matmul ----
    h2 = jnp.dot(h1, w2_ref[...], preferred_element_type=jnp.float32)
    h2 = jnp.maximum(h2 + b[1:2, :], 0.0)

    # ---- layer 3 (VPU + XLU): per-action dot = multiply + cross-lane reduce ----
    lane = jax.lax.broadcasted_iota(jnp.int32, (B, H), 1)
    out = jnp.zeros((B, H), jnp.float32)
    for a in range(n_actions):                         # static unroll (n_actions small)
        wa = w13[n_obs + a:n_obs + a + 1, :]           # (1, H)  = W3[:, a]^T
        qa = jnp.sum(h2 * wa, axis=-1, keepdims=True)  # (B, 1)
        out = jnp.where(lane == a, qa, out)
    # b3 row is zero beyond n_actions lanes, so the padded lanes stay clean.
    out_ref[...] = out + b[2:3, :]


def pack_dqn_params(w1, b1, w2, b2, w3, b3):
    """Pack per-layer params into 3 lane/sublane-aligned slabs (do this once)."""
    n_obs, H = w1.shape
    n_actions = w3.shape[1]
    rows = _round_up(n_obs + n_actions, 8)
    w13 = jnp.zeros((rows, H), jnp.float32)
    w13 = w13.at[:n_obs].set(w1.astype(jnp.float32))
    w13 = w13.at[n_obs:n_obs + n_actions].set(w3.T.astype(jnp.float32))
    b_pack = jnp.zeros((8, H), jnp.float32)
    b_pack = b_pack.at[0].set(jnp.ravel(b1).astype(jnp.float32))
    b_pack = b_pack.at[1].set(jnp.ravel(b2).astype(jnp.float32))
    b_pack = b_pack.at[2, :n_actions].set(jnp.ravel(b3).astype(jnp.float32))
    return w13, w2.astype(jnp.float32), b_pack


@functools.partial(jax.jit, static_argnames=("n_obs", "n_actions", "block_b"))
def dqn_forward_packed(x, w13, w2, b_pack, *, n_obs, n_actions, block_b=128):
    B = x.shape[0]
    H = w2.shape[0]

    # Pad batch to a sublane-aligned, block-aligned size.
    B_pad = _round_up(B, 8)
    block_b = min(block_b, B_pad)
    B_pad = _round_up(B_pad, block_b)
    x_pad = jnp.zeros((B_pad, n_obs), jnp.float32).at[:B].set(x.astype(jnp.float32))

    grid = (B_pad // block_b,)
    kernel = functools.partial(_dqn_kernel, n_obs=n_obs, n_actions=n_actions)

    out_pad = pl.pallas_call(
        kernel,
        out_shape=jax.ShapeDtypeStruct((B_pad, H), jnp.float32),
        grid=grid,
        in_specs=[
            pl.BlockSpec((block_b, n_obs), lambda i: (i, 0)),   # x: tiled on batch
            pl.BlockSpec(w13.shape, lambda i: (0, 0)),          # weights pinned:
            pl.BlockSpec(w2.shape, lambda i: (0, 0)),           #   VMEM-resident
            pl.BlockSpec(b_pack.shape, lambda i: (0, 0)),       #   across grid steps
        ],
        out_specs=pl.BlockSpec((block_b, H), lambda i: (i, 0)), # lane-dense output slab
        compiler_params=pltpu.CompilerParams(
            dimension_semantics=("parallel",)),                 # megacore-friendly
    )(x_pad, w13, w2, b_pack)

    return out_pad[:B, :n_actions]


def dqn_forward(x, w1, b1, w2, b2, w3, b3):
    """Convenience wrapper: pack + forward (pack once outside hot loops if possible)."""
    n_obs = w1.shape[0]
    n_actions = w3.shape[1]
    w13, w2p, b_pack = pack_dqn_params(w1, b1, w2, b2, w3, b3)
    return dqn_forward_packed(x, w13, w2p, b_pack, n_obs=n_obs, n_actions=n_actions)


if __name__ == "__main__":
    # CartPole-v1: n_observations = 4, n_actions = 2 (gym env itself not needed here)
    n_observations = 4
    n_actions = 2
    hidden = 128
    batch = 8

    key = jax.random.PRNGKey(0)
    k_x, k1, k2, k3 = jax.random.split(key, 4)

    def init_linear(key, fan_in, fan_out):
        # torch.nn.Linear default init: U(-1/sqrt(fan_in), 1/sqrt(fan_in))
        kw, kb = jax.random.split(key)
        bound = 1.0 / jnp.sqrt(jnp.float32(fan_in))
        w = jax.random.uniform(kw, (fan_in, fan_out), jnp.float32, -bound, bound)
        b = jax.random.uniform(kb, (fan_out,), jnp.float32, -bound, bound)
        return w, b

    x = jax.random.normal(k_x, (batch, n_observations), jnp.float32)
    w1, b1 = init_linear(k1, n_observations, hidden)
    w2, b2 = init_linear(k2, hidden, hidden)
    w3, b3 = init_linear(k3, hidden, n_actions)

    # Pack params once (amortized across every forward call).
    w13, w2p, b_pack = pack_dqn_params(w1, b1, w2, b2, w3, b3)

    out = dqn_forward_packed(x, w13, w2p, b_pack,
                             n_obs=n_observations, n_actions=n_actions)
    out = jax.block_until_ready(out)

    # Pure-JAX reference (same math as the PyTorch forward).
    ref = jnp.maximum(x @ w1 + b1[None, :], 0.0)
    ref = jnp.maximum(ref @ w2 + b2[None, :], 0.0)
    ref = ref @ w3 + b3[None, :]

    assert out.shape == (batch, n_actions)
    assert jnp.allclose(out, ref, atol=1e-4, rtol=1e-4), float(jnp.max(jnp.abs(out - ref)))

    print("KERNEL_OK")
</pallas_src>

<mosaic_0001>
module attributes {stable_mosaic.version = 11 : i64} {
  func.func @_dqn_kernel(%arg0: i32, %arg1: memref<8x4xf32, #tpu.memory_space<vmem>>, %arg2: memref<8x128xf32, #tpu.memory_space<vmem>>, %arg3: memref<128x128xf32, #tpu.memory_space<vmem>>, %arg4: memref<8x128xf32, #tpu.memory_space<vmem>>, %arg5: memref<8x128xf32, #tpu.memory_space<vmem>>) attributes {dimension_semantics = [#tpu.dimension_semantics<parallel>], iteration_bounds = array<i64: 1>, scalar_prefetch = 0 : i64, scratch_operands = 0 : i64, tpu.core_type = #tpu.core_type<tc>, window_params = [{transform_indices = @transform_0, window_bounds = array<i64: 8, 4>}, {pipeline_mode = #tpu.pipeline_mode<synchronous>, transform_indices = @transform_1, window_bounds = array<i64: 8, 128>}, {pipeline_mode = #tpu.pipeline_mode<synchronous>, transform_indices = @transform_2, window_bounds = array<i64: 128, 128>}, {pipeline_mode = #tpu.pipeline_mode<synchronous>, transform_indices = @transform_3, window_bounds = array<i64: 8, 128>}, {transform_indices = @transform_4, window_bounds = array<i64: 8, 128>}]} {
    %c0 = arith.constant 0 : index
    %c0_0 = arith.constant 0 : index
    %0 = vector.load %arg1[%c0, %c0_0] : memref<8x4xf32, #tpu.memory_space<vmem>>, vector<8x4xf32>
    %c0_1 = arith.constant 0 : index
    %c0_2 = arith.constant 0 : index
    %1 = vector.load %arg2[%c0_1, %c0_2] : memref<8x128xf32, #tpu.memory_space<vmem>>, vector<8x128xf32>
    %c0_3 = arith.constant 0 : index
    %c0_4 = arith.constant 0 : index
    %2 = vector.load %arg4[%c0_3, %c0_4] : memref<8x128xf32, #tpu.memory_space<vmem>>, vector<8x128xf32>
    %3 = vector.extract_strided_slice %0 {offsets = [0, 0], sizes = [8, 1], strides = [1, 1]} : vector<8x4xf32> to vector<8x1xf32>
    %4 = vector.extract_strided_slice %1 {offsets = [0, 0], sizes = [1, 128], strides = [1, 1]} : vector<8x128xf32> to vector<1x128xf32>
    %5 = vector.broadcast %3 : vector<8x1xf32> to vector<8x128xf32>
    %6 = vector.broadcast %4 : vector<1x128xf32> to vector<8x128xf32>
    %7 = arith.mulf %5, %6 : vector<8x128xf32>
    %8 = vector.extract_strided_slice %2 {offsets = [0, 0], sizes = [1, 128], strides = [1, 1]} : vector<8x128xf32> to vector<1x128xf32>
    %9 = vector.broadcast %8 : vector<1x128xf32> to vector<8x128xf32>
    %10 = arith.addf %7, %9 : vector<8x128xf32>
    %11 = vector.extract_strided_slice %0 {offsets = [0, 1], sizes = [8, 1], strides = [1, 1]} : vector<8x4xf32> to vector<8x1xf32>
    %12 = vector.extract_strided_slice %1 {offsets = [1, 0], sizes = [1, 128], strides = [1, 1]} : vector<8x128xf32> to vector<1x128xf32>
    %13 = vector.broadcast %11 : vector<8x1xf32> to vector<8x128xf32>
    %14 = vector.broadcast %12 : vector<1x128xf32> to vector<8x128xf32>
    %15 = arith.mulf %13, %14 : vector<8x128xf32>
    %16 = arith.addf %10, %15 : vector<8x128xf32>
    %17 = vector.extract_strided_slice %0 {offsets = [0, 2], sizes = [8, 1], strides = [1, 1]} : vector<8x4xf32> to vector<8x1xf32>
    %18 = vector.extract_strided_slice %1 {offsets = [2, 0], sizes = [1, 128], strides = [1, 1]} : vector<8x128xf32> to vector<1x128xf32>
    %19 = vector.broadcast %17 : vector<8x1xf32> to vector<8x128xf32>
    %20 = vector.broadcast %18 : vector<1x128xf32> to vector<8x128xf32>
    %21 = arith.mulf %19, %20 : vector<8x128xf32>
    %22 = arith.addf %16, %21 : vector<8x128xf32>
    %23 = vector.extract_strided_slice %0 {offsets = [0, 3], sizes = [8, 1], strides = [1, 1]} : vector<8x4xf32> to vector<8x1xf32>
    %24 = vector.extract_strided_slice %1 {offsets = [3, 0], sizes = [1, 128], strides = [1, 1]} : vector<8x128xf32> to vector<1x128xf32>
    %25 = vector.broadcast %23 : vector<8x1xf32> to vector<8x128xf32>
    %26 = vector.broadcast %24 : vector<1x128xf32> to vector<8x128xf32>
    %27 = arith.mulf %25, %26 : vector<8x128xf32>
    %28 = arith.addf %22, %27 : vector<8x128xf32>
    %cst = arith.constant 0.000000e+00 : f32
    %29 = vector.broadcast %cst : f32 to vector<8x128xf32>
    %30 = arith.maximumf %28, %29 : vector<8x128xf32>
    %c0_5 = arith.constant 0 : index
    %c0_6 = arith.constant 0 : index
    %31 = vector.load %arg3[%c0_5, %c0_6] : memref<128x128xf32, #tpu.memory_space<vmem>>, vector<128x128xf32>
    %cst_7 = arith.constant dense<0.000000e+00> : vector<8x128xf32>
    %32 = tpu.matmul %30, %31, %cst_7 {dimension_numbers = #tpu.dot_dimension_numbers<[1], [0], [0], [1], [0, 0, 1, 1], [], []>} : vector<8x128xf32>, vector<128x128xf32>, vector<8x128xf32> -> vector<8x128xf32>
    %33 = vector.extract_strided_slice %2 {offsets = [1, 0], sizes = [1, 128], strides = [1, 1]} : vector<8x128xf32> to vector<1x128xf32>
    %34 = vector.broadcast %33 : vector<1x128xf32> to vector<8x128xf32>
    %35 = arith.addf %32, %34 : vector<8x128xf32>
    %cst_8 = arith.constant 0.000000e+00 : f32
    %36 = vector.broadcast %cst_8 : f32 to vector<8x128xf32>
    %37 = arith.maximumf %35, %36 : vector<8x128xf32>
    %38 = tpu.iota {dimensions = array<i32: 1>} : vector<8x128xi32>
    %cst_9 = arith.constant 0.000000e+00 : f32
    %39 = vector.broadcast %cst_9 : f32 to vector<8x128xf32>
    %40 = vector.extract_strided_slice %1 {offsets = [4, 0], sizes = [1, 128], strides = [1, 1]} : vector<8x128xf32> to vector<1x128xf32>
    %41 = vector.broadcast %40 : vector<1x128xf32> to vector<8x128xf32>
    %42 = arith.mulf %37, %41 : vector<8x128xf32>
    %cst_10 = arith.constant dense<0.000000e+00> : vector<8xf32>
    %43 = vector.multi_reduction <add>, %42, %cst_10 [1] : vector<8x128xf32> to vector<8xf32>
    %44 = vector.shape_cast %43 : vector<8xf32> to vector<8x1xf32>
    %c0_i32 = arith.constant 0 : i32
    %45 = vector.broadcast %c0_i32 : i32 to vector<8x128xi32>
    %46 = arith.cmpi eq, %38, %45 : vector<8x128xi32>
    %47 = vector.shape_cast %44 : vector<8x1xf32> to vector<8x1xf32>
    %48 = vector.broadcast %47 : vector<8x1xf32> to vector<8x128xf32>
    %49 = arith.select %46, %48, %39 : vector<8x128xi1>, vector<8x128xf32>
    %50 = vector.extract_strided_slice %1 {offsets = [5, 0], sizes = [1, 128], strides = [1, 1]} : vector<8x128xf32> to vector<1x128xf32>
    %51 = vector.broadcast %50 : vector<1x128xf32> to vector<8x128xf32>
    %52 = arith.mulf %37, %51 : vector<8x128xf32>
    %cst_11 = arith.constant dense<0.000000e+00> : vector<8xf32>
    %53 = vector.multi_reduction <add>, %52, %cst_11 [1] : vector<8x128xf32> to vector<8xf32>
    %54 = vector.shape_cast %53 : vector<8xf32> to vector<8x1xf32>
    %c1_i32 = arith.constant 1 : i32
    %55 = vector.broadcast %c1_i32 : i32 to vector<8x128xi32>
    %56 = arith.cmpi eq, %38, %55 : vector<8x128xi32>
    %57 = vector.shape_cast %54 : vector<8x1xf32> to vector<8x1xf32>
    %58 = vector.broadcast %57 : vector<8x1xf32> to vector<8x128xf32>
    %59 = arith.select %56, %58, %49 : vector<8x128xi1>, vector<8x128xf32>
    %60 = vector.extract_strided_slice %2 {offsets = [2, 0], sizes = [1, 128], strides = [1, 1]} : vector<8x128xf32> to vector<1x128xf32>
    %61 = vector.broadcast %60 : vector<1x128xf32> to vector<8x128xf32>
    %62 = arith.addf %59, %61 : vector<8x128xf32>
    %c0_12 = arith.constant 0 : index
    %c0_13 = arith.constant 0 : index
    %63 = vector.load %arg5[%c0_12, %c0_13] : memref<8x128xf32, #tpu.memory_space<vmem>>, vector<8x128xf32>
    tpu.vector_store %arg5[%c0_12, %c0_13], %62 {strides = array<i32>} : memref<8x128xf32, #tpu.memory_space<vmem>>, vector<8x128xf32>,
    return
  }
  func.func @transform_0(%arg0: i32) -> (i32, i32) {
    %c0_i32 = arith.constant 0 : i32
    %c0_i32_0 = arith.constant 0 : i32
    return %arg0, %c0_i32 : i32, i32
  }
  func.func @transform_1(%arg0: i32) -> (i32, i32) {
    %c0_i32 = arith.constant 0 : i32
    %c0_i32_0 = arith.constant 0 : i32
    %c0_i32_1 = arith.constant 0 : i32
    return %c0_i32, %c0_i32_0 : i32, i32
  }
  func.func @transform_2(%arg0: i32) -> (i32, i32) {
    %c0_i32 = arith.constant 0 : i32
    %c0_i32_0 = arith.constant 0 : i32
    %c0_i32_1 = arith.constant 0 : i32
    return %c0_i32, %c0_i32_0 : i32, i32
  }
  func.func @transform_3(%arg0: i32) -> (i32, i32) {
    %c0_i32 = arith.constant 0 : i32
    %c0_i32_0 = arith.constant 0 : i32
    %c0_i32_1 = arith.constant 0 : i32
    return %c0_i32, %c0_i32_0 : i32, i32
  }
  func.func @transform_4(%arg0: i32) -> (i32, i32) {
    %c0_i32 = arith.constant 0 : i32
    %c0_i32_0 = arith.constant 0 : i32
    return %arg0, %c0_i32 : i32, i32
  }
}

</mosaic_0001>

<llo_original>
// kernel: dqn_forward_packed.1
$region0: #{dqn_forward_packed.1}
  #allocation0 [shape = 'u32[]', space=smem, size = 0x4, offset = 0x4, fixed_abs, tag = 'smem constant byte address 0x4 - core index']
  #allocation1 [shape = 'u32[72,128]{1,0:T(1,128)}', space=vmem, size = 0x9000, scoped, tag = 'internal scratch']
  %s0 = inlined_call_operand.vmem [shape: f32[8,4], index: 0, kind: input, shape index: {}]
  %s1 = inlined_call_operand.vmem [shape: f32[8,128], index: 1, kind: input, shape index: {}]
  %s2 = inlined_call_operand.hbm [shape: f32[128,128], index: 2, kind: input, shape index: {}]
  %s3 = inlined_call_operand.hbm [shape: f32[8,128], index: 3, kind: input, shape index: {}]
  %s4 = inlined_call_operand.vmem [shape: f32[8,128], index: 4, kind: output, shape index: {}]
  %s5 = sld [smem:[#allocation0]]
  $region34: #{dqn_forward_packed.1} parent=0
    _
  %s7 = ssub.s32 1, %s5
  %s8 = scalar_select 0, %s7, %s5
  $region1: #{dqn_forward_packed.1} parent=0
    #allocation2 [shape = 'u8[65536]{0}', space=vmem, size = 0x10000, scoped, tag = 'input window, operand 2, single buffered']
    #allocation3 [shape = 's32[1]{0}', space=sflag, size = 0x4, scoped, tag = 'scoped memory for dqn_forward_packed.1']
    #allocation4 [shape = 'u8[4096]{0}', space=vmem, size = 0x1000, scoped, tag = 'input window, operand 3, single buffered']
    #allocation5 [shape = 's32[1]{0}', space=sflag, size = 0x4, scoped, tag = 'scoped memory for dqn_forward_packed.1']
    %9 = vsyncpa [#allocation3], 0
    %10 = vsyncpa [#allocation5], 0
    // Predicated region
    $region2: #{dqn_forward_packed.1} parent=1 // pred_check
      _
    $region3: #{dqn_forward_packed.1} parent=1 // pred_check_branch
      %12 = sbr.rel (0) target = $region5
    $region4: #{dqn_forward_packed.1} parent=1 // pred_region
      _
    $region5: #{dqn_forward_packed.1} parent=1 // pred_fallthru
      _
    // Predicated region
    $region6: #{dqn_forward_packed.1} parent=1 // pred_check
      _
    $region7: #{dqn_forward_packed.1} parent=1 // pred_check_branch
      %14 = sbr.rel (0) target = $region9
    $region8: #{dqn_forward_packed.1} parent=1 // pred_region
      _
    $region9: #{dqn_forward_packed.1} parent=1 // pred_fallthru
      _
    // Predicated region
    $region10: #{dqn_forward_packed.1} parent=1 // pred_check
      _
    $region11: #{dqn_forward_packed.1} parent=1 // pred_check_branch
      %16 = sbr.rel (0) target = $region13
    $region12: #{dqn_forward_packed.1} parent=1 // pred_region
      %18 = vsyncadd [#allocation3], 0
      %s19 = sshll.u32 %s2, 4
      %s20 = int_to_ptr.hbm [resolvable:$true] %s19
      %s21 = sshll.u32 [#allocation2], 4
      %s22 = int_to_ptr.vmem [resolvable:$true] %s21
      %27 = dma.hbm_to_vmem [thread:$0]  %s20, 2048, %s22, [#allocation3], 128, 128, 8
    $region13: #{dqn_forward_packed.1} parent=1 // pred_fallthru
      _
    // Predicated region
    $region14: #{dqn_forward_packed.1} parent=1 // pred_check
      _
    $region15: #{dqn_forward_packed.1} parent=1 // pred_check_branch
      %29 = sbr.rel (0) target = $region17
    $region16: #{dqn_forward_packed.1} parent=1 // pred_region
      %31 = vsyncadd [#allocation5], 0
      %s33 = sshll.u32 %s3, 4
      %s34 = int_to_ptr.hbm [resolvable:$true] %s33
      %s35 = sshll.u32 [#allocation4], 4
      %s36 = int_to_ptr.vmem [resolvable:$true] %s35
      %38 = dma.hbm_to_vmem [thread:$0]  %s34, 128, %s36, [#allocation5]
    $region17: #{dqn_forward_packed.1} parent=1 // pred_fallthru
      _
    // Predicated region
    $region18: #{dqn_forward_packed.1} parent=1 // pred_check
      _
    $region19: #{dqn_forward_packed.1} parent=1 // pred_check_branch
      %40 = sbr.rel (0) target = $region21
    $region20: #{dqn_forward_packed.1} parent=1 // pred_region
      %42 = dma.done [#allocation3], 2048
    $region21: #{dqn_forward_packed.1} parent=1 // pred_fallthru
      _
    // Predicated region
    $region22: #{dqn_forward_packed.1} parent=1 // pred_check
      _
    $region23: #{dqn_forward_packed.1} parent=1 // pred_check_branch
      %44 = sbr.rel (0) target = $region25
    $region24: #{dqn_forward_packed.1} parent=1 // pred_region
      %46 = dma.done [#allocation5], 128
    $region25: #{dqn_forward_packed.1} parent=1 // pred_fallthru
      _
    %v47 = vld [vmem:[%s0] sm:$0xff]
    %v48 = vld [vmem:[%s1] sm:$0xff]
    %v49 = vld [vmem:[#allocation4] sm:$0xff]
    %51 = vset.pattern.permute.xlu0 0
    %52 = vperm.xlu0 %51, %v47
    %v53 = vpop.permute.xlu0 %52
    %v55 = vperm.slane %v48, 0
    %v56 = vmul.f32 %v53, %v55
    %v57 = vperm.slane %v49, 0
    %v58 = vadd.f32 %v56, %v57
    %59 = vset.pattern.permute.xlu0 1
    %60 = vperm.xlu0 %59, %v47
    %v61 = vpop.permute.xlu0 %60
    %v63 = vperm.slane %v48, 1
    %v64 = vmul.f32 %v61, %v63
    %v65 = vadd.f32 %v58, %v64
    %66 = vset.pattern.permute.xlu0 2
    %67 = vperm.xlu0 %66, %v47
    %v68 = vpop.permute.xlu0 %67
    %v70 = vperm.slane %v48, 2
    %v71 = vmul.f32 %v68, %v70
    %v72 = vadd.f32 %v65, %v71
    %73 = vset.pattern.permute.xlu0 3
    %74 = vperm.xlu0 %73, %v47
    %v75 = vpop.permute.xlu0 %74
    %v77 = vperm.slane %v48, 3
    %v78 = vmul.f32 %v75, %v77
    %v79 = vadd.f32 %v72, %v78
    %v80 = vmax.f32 %v79, 0.0
    %v81 = vld [vmem:[#allocation2] sm:$0xff]
    %v82 = vld [vmem:[#allocation2 + $0x8] sm:$0xff]
    %v83 = vld [vmem:[#allocation2 + $0x10] sm:$0xff]
    %v84 = vld [vmem:[#allocation2 + $0x18] sm:$0xff]
    %v85 = vld [vmem:[#allocation2 + $0x20] sm:$0xff]
    %v86 = vld [vmem:[#allocation2 + $0x28] sm:$0xff]
    %v87 = vld [vmem:[#allocation2 + $0x30] sm:$0xff]
    %v88 = vld [vmem:[#allocation2 + $0x38] sm:$0xff]
    %v89 = vld [vmem:[#allocation2 + $0x40] sm:$0xff]
    %v90 = vld [vmem:[#allocation2 + $0x48] sm:$0xff]
    %v91 = vld [vmem:[#allocation2 + $0x50] sm:$0xff]
    %v92 = vld [vmem:[#allocation2 + $0x58] sm:$0xff]
    %v93 = vld [vmem:[#allocation2 + $0x60] sm:$0xff]
    %v94 = vld [vmem:[#allocation2 + $0x68] sm:$0xff]
    %v95 = vld [vmem:[#allocation2 + $0x70] sm:$0xff]
    %v96 = vld [vmem:[#allocation2 + $0x78] sm:$0xff]
    %v97 = vperm.slane %v49, 1
    %98 = vmatpush.msra.mxu0 %v96
    %99 = vmatpush.msra.mxu0 %v95
    %100 = vmatpush.msra.mxu0 %v94
    %101 = vmatpush.msra.mxu0 %v93
    %102 = vmatpush.msra.mxu0 %v92
    %103 = vmatpush.msra.mxu0 %v91
    %104 = vmatpush.msra.mxu0 %v90
    %105 = vmatpush.msra.mxu0 %v89
    %106 = vmatpush.msra.mxu0 %v88
    %107 = vmatpush.msra.mxu0 %v87
    %108 = vmatpush.msra.mxu0 %v86
    %109 = vmatpush.msra.mxu0 %v85
    %110 = vmatpush.msra.mxu0 %v84
    %111 = vmatpush.msra.mxu0 %v83
    %112 = vmatpush.msra.mxu0 %v82
    %113 = vmatpush.msra.mxu0 %v81
    %114 = vmatmul.f32.gmra.mxu0 %v80
    %v115 = vpop.f32.mrf.mxu0
    %v116 = vadd.f32 %v97, %v115
    %117 = vdwg.mxu0
    %v118 = vmax.f32 %v116, 0.0
    %v119 = vlaneseq
    %v120 = vand.u32 %v119, 127
    %v121 = vperm.slane %v48, 4
    %v122 = vmul.f32 %v118, %v121
    %123 = vadd.xlane.f32.xlu0 %v122
    %v124 = vpop.xlane.xlu0 %123
    %vm125 = vcmp.eq.s32.totalorder %v120, 0
    %v126 = vsel %vm125, %v124, 0.0
    %v127 = vperm.slane %v48, 5
    %v128 = vmul.f32 %v118, %v127
    %129 = vadd.xlane.f32.xlu0 %v128
    %v130 = vpop.xlane.xlu0 %129
    %vm131 = vcmp.eq.s32.totalorder %v120, 1
    %v132 = vsel %vm131, %v130, %v126
    %v133 = vperm.slane %v49, 2
    %v134 = vadd.f32 %v132, %v133
    %135 = vst [vmem:[%s4] sm:$0xff] %v134
    // Predicated region
    $region26: #{dqn_forward_packed.1} parent=1 // pred_check
      _
    $region27: #{dqn_forward_packed.1} parent=1 // pred_check_branch
      %137 = sbr.rel (0) target = $region29
    $region28: #{dqn_forward_packed.1} parent=1 // pred_region
      _
    $region29: #{dqn_forward_packed.1} parent=1 // pred_fallthru
      _
    // Predicated region
    $region30: #{dqn_forward_packed.1} parent=1 // pred_check
      _
    $region31: #{dqn_forward_packed.1} parent=1 // pred_check_branch
      %139 = sbr.rel (0) target = $region33
    $region32: #{dqn_forward_packed.1} parent=1 // pred_region
      _
    $region33: #{dqn_forward_packed.1} parent=1 // pred_fallthru
      _
    %140 = vsyncpa [#allocation3], 1
    %141 = vsyncpa [#allocation5], 1

</llo_original>
